<compile_context>
chip_gen: v6e
topology: v6e:2x2x1
jax: 0.10.0
libtpu: 0.0.40
codegen_flags: <defaults>
</compile_context>

<pallas_src>
import functools

import numpy as np
import jax
import jax.numpy as jnp
from jax.experimental import pallas as pl
from jax.experimental.pallas import tpu as pltpu


_MAX_INFLIGHT_DMAS = 8


def _gather_runs_kernel(x_hbm, o_hbm, sems, *, runs, depth):
    """Copy each (src_start, dst_start, length) channel run directly HBM->HBM."""

    def _copy(i):
        src_start, dst_start, length = runs[i]
        return pltpu.make_async_copy(
            x_hbm.at[:, pl.ds(src_start, length), :],
            o_hbm.at[:, pl.ds(dst_start, length), :],
            sems.at[i % depth],
        )

    n_runs = len(runs)
    # Issue with at most `depth` copies outstanding (semaphore ring).
    for i in range(n_runs):
        if i >= depth:
            _copy(i - depth).wait()
        _copy(i).start()
    # Drain the tail.
    for i in range(max(n_runs - depth, 0), n_runs):
        _copy(i).wait()


def _coalesce_runs(selected_index):
    """[0,2,3,4,7] -> [(0,0,1), (2,1,3), (7,4,1)] as (src_start, dst_start, len)."""
    runs = []
    dst = 0
    i = 0
    n = len(selected_index)
    while i < n:
        j = i
        while j + 1 < n and selected_index[j + 1] == selected_index[j] + 1:
            j += 1
        length = j - i + 1
        runs.append((int(selected_index[i]), dst, length))
        dst += length
        i = j + 1
    return runs


def channel_selection_forward(x, indexes, select_num=None):
    """
    x:          (N, C, H, W), NCHW (output of a BatchNorm2d layer).
    indexes:    (C,) host/numpy array; channels with nonzero entries are kept.
    select_num: if truthy, keep the first `select_num` channels instead.
                (select_num=0 falls through to the `indexes` path, matching
                the PyTorch `if self.select_num:` behaviour.)
    Returns (N, C_sel, H, W).
    """
    N, C, H, W = x.shape

    # Host-side index computation (mirrors the numpy logic of the PyTorch
    # module; `indexes` must be a host array, not a traced value).
    if select_num:
        selected_index = np.squeeze(np.argwhere(np.ones(select_num)))
        if selected_index.size == 1:
            selected_index = np.resize(selected_index, (1,))
    else:
        selected_index = np.squeeze(np.argwhere(np.asarray(indexes)))
        if selected_index.size == 1:
            selected_index = np.resize(selected_index, (1,))

    selected_index = np.asarray(selected_index, dtype=np.int64).reshape(-1)
    c_sel = int(selected_index.shape[0])

    # Degenerate case: everything pruned -> no kernel call.
    if c_sel == 0:
        return jnp.zeros((N, 0, H, W), dtype=x.dtype)

    # Flatten spatial dims (free reshape): each (batch, channel-run) slab is a
    # single contiguous chunk for the DMA engine.
    hw = H * W
    x_flat = x.reshape(N, C, hw)

    runs = _coalesce_runs(selected_index)
    depth = min(_MAX_INFLIGHT_DMAS, len(runs))

    kernel = functools.partial(_gather_runs_kernel, runs=runs, depth=depth)

    out_flat = pl.pallas_call(
        kernel,
        out_shape=jax.ShapeDtypeStruct((N, c_sel, hw), x.dtype),
        in_specs=[pl.BlockSpec(memory_space=pl.ANY)],    # raw HBM ref, no auto-DMA
        out_specs=pl.BlockSpec(memory_space=pl.ANY),     # written only via DMA
        scratch_shapes=[pltpu.SemaphoreType.DMA((depth,))],
        compiler_params=pltpu.CompilerParams(has_side_effects=True),
    )(x_flat)

    return out_flat.reshape(N, c_sel, H, W)


class ChannelSelection:
    """JAX/Pallas equivalent of the PyTorch channel_selection module."""

    def __init__(self, num_channels, select_num=None):
        # Equivalent of nn.Parameter(torch.ones(num_channels)).
        self.indexes = np.ones(num_channels, dtype=np.float32)
        self.num_channels = num_channels
        self.select_num = select_num

    def get_num_channels(self):
        return self.num_channels

    def __call__(self, input_tensor):
        return channel_selection_forward(
            input_tensor, self.indexes, self.select_num
        )


if __name__ == "__main__":
    key = jax.random.PRNGKey(0)
    N, C, H, W = 2, 4, 16, 16
    x = jax.random.normal(key, (N, C, H, W), dtype=jnp.float32)
    x_np = np.asarray(x)

    # Case 1: default (all channels kept) -> single contiguous DMA.
    layer = ChannelSelection(num_channels=C)
    out_all = jax.block_until_ready(layer(x))
    assert out_all.shape == (N, C, H, W)
    np.testing.assert_array_equal(np.asarray(out_all), x_np)

    # Case 2: pruning mask with a gap -> two coalesced runs, ring of 2 DMAs.
    layer_pruned = ChannelSelection(num_channels=C)
    layer_pruned.indexes = np.array([1.0, 0.0, 1.0, 1.0], dtype=np.float32)
    out_pruned = jax.block_until_ready(layer_pruned(x))
    assert out_pruned.shape == (N, 3, H, W)
    np.testing.assert_array_equal(np.asarray(out_pruned), x_np[:, [0, 2, 3], :, :])

    # Case 3: single surviving channel (exercises the size-1 np.resize path).
    layer_one = ChannelSelection(num_channels=C)
    layer_one.indexes = np.array([0.0, 0.0, 1.0, 0.0], dtype=np.float32)
    out_one = jax.block_until_ready(layer_one(x))
    assert out_one.shape == (N, 1, H, W)
    np.testing.assert_array_equal(np.asarray(out_one), x_np[:, [2], :, :])

    # Case 4: select_num path (first k channels) -> single contiguous DMA.
    layer_k = ChannelSelection(num_channels=C, select_num=2)
    out_k = jax.block_until_ready(layer_k(x))
    assert out_k.shape == (N, 2, H, W)
    np.testing.assert_array_equal(np.asarray(out_k), x_np[:, :2, :, :])

    print("KERNEL_OK")
</pallas_src>

<mosaic_0001>
module attributes {stable_mosaic.version = 11 : i64} {
  func.func @_gather_runs_kernel(%arg0: memref<2x4x256xf32, #tpu.memory_space<any>>, %arg1: memref<2x4x256xf32, #tpu.memory_space<any>>, %arg2: memref<1x!tpu.dma_semaphore, #tpu.memory_space<semaphore_mem>>) attributes {dimension_semantics = [], scalar_prefetch = 0 : i64, scratch_operands = 1 : i64, tpu.core_type = #tpu.core_type<tc>} {
    %c0_i32 = arith.constant 0 : i32
    %c0_i32_0 = arith.constant 0 : i32
    %c0_i32_1 = arith.constant 0 : i32
    %c0_i32_2 = arith.constant 0 : i32
    %0 = tpu.memref_slice %arg0[%c0_i32_0, %c0_i32_1, %c0_i32_2] : memref<2x4x256xf32, #tpu.memory_space<any>> -> memref<2x4x256xf32, #tpu.memory_space<any>>
    %c0_i32_3 = arith.constant 0 : i32
    %c0_i32_4 = arith.constant 0 : i32
    %c0_i32_5 = arith.constant 0 : i32
    %1 = tpu.memref_slice %arg1[%c0_i32_3, %c0_i32_4, %c0_i32_5] : memref<2x4x256xf32, #tpu.memory_space<any>> -> memref<2x4x256xf32, #tpu.memory_space<any>>
    %2 = tpu.memref_slice %arg2[%c0_i32] : memref<1x!tpu.dma_semaphore, #tpu.memory_space<semaphore_mem>> -> memref<1x!tpu.dma_semaphore, #tpu.memory_space<semaphore_mem>>
    %3 = tpu.memref_squeeze %2 : memref<1x!tpu.dma_semaphore, #tpu.memory_space<semaphore_mem>> -> memref<!tpu.dma_semaphore, #tpu.memory_space<semaphore_mem>>
    tpu.enqueue_dma source(%0 : memref<2x4x256xf32, #tpu.memory_space<any>>) target(%1 : memref<2x4x256xf32, #tpu.memory_space<any>>) target_semaphore(%3 : memref<!tpu.dma_semaphore, #tpu.memory_space<semaphore_mem>>)
    %c0_i32_6 = arith.constant 0 : i32
    %c0_i32_7 = arith.constant 0 : i32
    %c0_i32_8 = arith.constant 0 : i32
    %c0_i32_9 = arith.constant 0 : i32
    %4 = tpu.memref_slice %arg0[%c0_i32_7, %c0_i32_8, %c0_i32_9] : memref<2x4x256xf32, #tpu.memory_space<any>> -> memref<2x4x256xf32, #tpu.memory_space<any>>
    %c0_i32_10 = arith.constant 0 : i32
    %c0_i32_11 = arith.constant 0 : i32
    %c0_i32_12 = arith.constant 0 : i32
    %5 = tpu.memref_slice %arg1[%c0_i32_10, %c0_i32_11, %c0_i32_12] : memref<2x4x256xf32, #tpu.memory_space<any>> -> memref<2x4x256xf32, #tpu.memory_space<any>>
    %6 = tpu.memref_slice %arg2[%c0_i32_6] : memref<1x!tpu.dma_semaphore, #tpu.memory_space<semaphore_mem>> -> memref<1x!tpu.dma_semaphore, #tpu.memory_space<semaphore_mem>>
    %7 = tpu.memref_squeeze %6 : memref<1x!tpu.dma_semaphore, #tpu.memory_space<semaphore_mem>> -> memref<!tpu.dma_semaphore, #tpu.memory_space<semaphore_mem>>
    tpu.wait_dma2 semaphore(%7 : memref<!tpu.dma_semaphore, #tpu.memory_space<semaphore_mem>>) src(%4 : memref<2x4x256xf32, #tpu.memory_space<any>>) dst(%5 : memref<2x4x256xf32, #tpu.memory_space<any>>)
    return
  }
}

</mosaic_0001>

<llo_original>
// kernel: tpu_custom_call.1
$region0: #{tpu_custom_call.1}
  #allocation0 [shape = 'u32[]', space=smem, size = 0x4, offset = 0x4, fixed_abs, tag = 'smem constant byte address 0x4 - core index']
  #allocation1 [shape = 'u32[144,128]{1,0:T(1,128)}', space=vmem, size = 0x12000, scoped, tag = 'internal scratch']
  #allocation2 [shape = 's32[1]{0}', space=sflag, size = 0x4, scoped, tag = 'scratch operand']
  #allocation3 [shape = 's32[]', space=sflag, size = 0x4, offset = 0, fixed_abs, tag = 'sflag constant byte address 0x0 - dummy sync flag']
  #allocation4 [shape = 'u32[0]{0}', space=smem, size = 0, offset = 0, fixed_abs, tag = 'smem constant byte address 0x0 - null']
  %s0 = inlined_call_operand.hbm [shape: f32[2,4,256], index: 0, kind: input, shape index: {}]
  %s1 = inlined_call_operand.hbm [shape: f32[2,4,256], index: 1, kind: output, shape index: {}]
  %s2 = sld [smem:[#allocation0]]
  $region2: #{tpu_custom_call.1} parent=0
    _
  %s4 = ssub.s32 1, %s2
  %s5 = scalar_select 0, %s4, %s2
  %s7 = sshll.u32 1, 14
  %s8 = sxor.u32 4294967295, %s7
  %12 = dma.general %s0, 256, %s1, [#allocation2], 131072, [#allocation4], 0, 0
  %s13 = smul.u32 4, 2
  %s14 = smul.u32 %s13, 1
  %s15 = smul.u32 %s14, 2
  %s16 = sshll.u32 %s15, 4
  %17 = dma.done [#allocation2], %s16
  %18 = vsyncmov [#allocation2]
  %s19 = vpop.sfrf %18
  %p20 = scmp.eq.s32.totalorder %s19, 0
  %p21 = pneg %p20
  %23 = shalt.err (%p21)

</llo_original>
